<compile_context>
chip_gen: v6e
topology: v6e:2x2x1
jax: 0.10.0
libtpu: 0.0.40
codegen_flags: <defaults>
</compile_context>

<pallas_src>
import jax
import jax.numpy as jnp
from jax.experimental import pallas as pl
from jax.experimental.pallas import tpu as pltpu


def _round_up(x, m):
    return -(-x // m) * m


def _make_mac_kernel(hw, tile_hw):
    """Build the kernel; hw / tile_hw are compile-time constants."""
    needs_mask = (hw % tile_hw) != 0

    def kernel(x_ref, o_ref, acc_ref):
        # grid = (row_tile, hw_tile); hw (reduction) axis is last.
        k = pl.program_id(1)

        @pl.when(k == 0)
        def _():
            acc_ref[...] = jnp.full_like(acc_ref, -jnp.inf)

        x = x_ref[...].astype(jnp.float32)
        if needs_mask:
            # Last hw tile may run past H*W: mask padded columns with -inf so
            # they never win the max.
            col = jax.lax.broadcasted_iota(jnp.int32, x.shape, 1) + k * tile_hw
            x = jnp.where(col < hw, x, -jnp.inf)

        acc_ref[...] = jnp.maximum(
            acc_ref[...], jnp.max(x, axis=-1, keepdims=True)
        )

        @pl.when(k == pl.num_programs(1) - 1)
        def _():
            o_ref[...] = acc_ref[...].astype(o_ref.dtype)

    return kernel


def _choose_tiles(rows, hw, itemsize):
    """Pick (tile_r, tile_hw) so each input block stays ~<= 4 MiB.

    With double buffering that is ~8 MiB of input VMEM, comfortably inside the
    scoped limits of v5e (16 MiB default), v6e and v7x (32 MiB).
    """
    target = 4 * 1024 * 1024
    sub = 8 if itemsize >= 4 else (16 if itemsize == 2 else 32)  # sublane mult
    lane = 128

    # Prefer keeping the full spatial extent in one block (no hw-axis padding);
    # only tile hw when even a minimum-height block would blow the budget.
    if sub * hw * itemsize <= target:
        tile_hw = hw
    else:
        tile_hw = max(lane, (target // (sub * itemsize)) // lane * lane)

    if rows <= sub:
        tile_r = rows  # block dim == full array dim is always legal
    else:
        tile_r = max(sub, (target // (tile_hw * itemsize)) // sub * sub)
        tile_r = min(tile_r, _round_up(rows, sub))
    return tile_r, tile_hw


def mac_pool(x):
    """Global max pooling, equivalent to F.max_pool2d(x, (H, W)).

    x: (N, C, H, W)  ->  (N, C, 1, 1)
    """
    n, c, h, w = x.shape
    rows = n * c
    hw = h * w
    itemsize = jnp.dtype(x.dtype).itemsize

    x2d = x.reshape(rows, hw)
    tile_r, tile_hw = _choose_tiles(rows, hw, itemsize)
    grid = (pl.cdiv(rows, tile_r), pl.cdiv(hw, tile_hw))

    out2d = pl.pallas_call(
        _make_mac_kernel(hw, tile_hw),
        out_shape=jax.ShapeDtypeStruct((rows, 1), x.dtype),
        grid_spec=pltpu.PrefetchScalarGridSpec(
            num_scalar_prefetch=0,
            grid=grid,
            in_specs=[pl.BlockSpec((tile_r, tile_hw), lambda i, k: (i, k))],
            out_specs=pl.BlockSpec((tile_r, 1), lambda i, k: (i, 0)),
            scratch_shapes=[pltpu.VMEM((tile_r, 1), jnp.float32)],
        ),
        compiler_params=pltpu.CompilerParams(
            dimension_semantics=("parallel", "arbitrary"),
            vmem_limit_bytes=32 * 1024 * 1024,
        ),
        cost_estimate=pl.CostEstimate(
            flops=rows * hw,
            transcendentals=0,
            bytes_accessed=rows * hw * itemsize + rows * itemsize,
        ),
    )(x2d)

    return out2d.reshape(n, c, 1, 1)


if __name__ == "__main__":
    key = jax.random.PRNGKey(0)
    # small shapes consistent with the module: batch=2, channels=4, spatial=16
    x = jax.random.normal(key, (2, 4, 16, 16), dtype=jnp.float32)

    out = mac_pool(x)
    jax.block_until_ready(out)

    # sanity-check against the pure-JAX reference (global MAX pool == MAC)
    ref = jnp.max(x, axis=(-2, -1), keepdims=True)
    assert out.shape == (2, 4, 1, 1), out.shape
    assert jnp.allclose(out, ref, atol=1e-6, rtol=1e-6)

    print("KERNEL_OK")
</pallas_src>

<mosaic_0001>
module attributes {stable_mosaic.version = 11 : i64} {
  func.func @kernel(%arg0: i32, %arg1: i32, %arg2: memref<8x256xf32, #tpu.memory_space<vmem>>, %arg3: memref<8x1xf32, #tpu.memory_space<vmem>>, %arg4: memref<8x1xf32, #tpu.memory_space<vmem>>) attributes {dimension_semantics = [#tpu.dimension_semantics<parallel>, #tpu.dimension_semantics<arbitrary>], iteration_bounds = array<i64: 1, 1>, scalar_prefetch = 0 : i64, scratch_operands = 1 : i64, tpu.core_type = #tpu.core_type<tc>, window_params = [{transform_indices = @transform_0, window_bounds = array<i64: 8, 256>}, {transform_indices = @transform_1, window_bounds = array<i64: 8, 1>}]} {
    %c0_i32 = arith.constant 0 : i32
    %0 = arith.cmpi eq, %arg1, %c0_i32 : i32
    %1 = arith.extui %0 : i1 to i32
    %c0_i32_0 = arith.constant 0 : i32
    %2 = arith.cmpi ne, %1, %c0_i32_0 : i32
    scf.if %2 {
      %cst_8 = arith.constant 0xFF800000 : f32
      %12 = vector.broadcast %cst_8 : f32 to vector<8x1xf32>
      %c0_9 = arith.constant 0 : index
      %c0_10 = arith.constant 0 : index
      %13 = vector.load %arg4[%c0_9, %c0_10] : memref<8x1xf32, #tpu.memory_space<vmem>>, vector<8x1xf32>
      tpu.vector_store %arg4[%c0_9, %c0_10], %12 {strides = array<i32>} : memref<8x1xf32, #tpu.memory_space<vmem>>, vector<8x1xf32>,
    } else {
    }
    %c0 = arith.constant 0 : index
    %c0_1 = arith.constant 0 : index
    %3 = vector.load %arg2[%c0, %c0_1] : memref<8x256xf32, #tpu.memory_space<vmem>>, vector<8x256xf32>
    %c0_2 = arith.constant 0 : index
    %c0_3 = arith.constant 0 : index
    %4 = vector.load %arg4[%c0_2, %c0_3] : memref<8x1xf32, #tpu.memory_space<vmem>>, vector<8x1xf32>
    %cst = arith.constant dense<0xFF800000> : vector<8xf32>
    %5 = vector.multi_reduction <maximumf>, %3, %cst [1] : vector<8x256xf32> to vector<8xf32>
    %6 = vector.shape_cast %5 : vector<8xf32> to vector<8x1xf32>
    %7 = arith.maximumf %4, %6 : vector<8x1xf32>
    %c0_4 = arith.constant 0 : index
    %c0_5 = arith.constant 0 : index
    %8 = vector.load %arg4[%c0_4, %c0_5] : memref<8x1xf32, #tpu.memory_space<vmem>>, vector<8x1xf32>
    tpu.vector_store %arg4[%c0_4, %c0_5], %7 {strides = array<i32>} : memref<8x1xf32, #tpu.memory_space<vmem>>, vector<8x1xf32>,
    %c0_i32_6 = arith.constant 0 : i32
    %9 = arith.cmpi eq, %arg1, %c0_i32_6 : i32
    %10 = arith.extui %9 : i1 to i32
    %c0_i32_7 = arith.constant 0 : i32
    %11 = arith.cmpi ne, %10, %c0_i32_7 : i32
    scf.if %11 {
      %c0_8 = arith.constant 0 : index
      %c0_9 = arith.constant 0 : index
      %12 = vector.load %arg4[%c0_8, %c0_9] : memref<8x1xf32, #tpu.memory_space<vmem>>, vector<8x1xf32>
      %c0_10 = arith.constant 0 : index
      %c0_11 = arith.constant 0 : index
      %13 = vector.load %arg3[%c0_10, %c0_11] : memref<8x1xf32, #tpu.memory_space<vmem>>, vector<8x1xf32>
      tpu.vector_store %arg3[%c0_10, %c0_11], %12 {strides = array<i32>} : memref<8x1xf32, #tpu.memory_space<vmem>>, vector<8x1xf32>,
    } else {
    }
    return
  }
  func.func @transform_0(%arg0: i32, %arg1: i32) -> (i32, i32) {
    %c0_i32 = arith.constant 0 : i32
    return %arg0, %arg1 : i32, i32
  }
  func.func @transform_1(%arg0: i32, %arg1: i32) -> (i32, i32) {
    %c0_i32 = arith.constant 0 : i32
    %c0_i32_0 = arith.constant 0 : i32
    return %arg0, %c0_i32 : i32, i32
  }
}

</mosaic_0001>

<llo_original>
// kernel: tpu_custom_call.1
$region0: #{tpu_custom_call.1}
  #allocation0 [shape = 'u32[]', space=smem, size = 0x4, offset = 0x4, fixed_abs, tag = 'smem constant byte address 0x4 - core index']
  #allocation1 [shape = 'u32[144,128]{1,0:T(1,128)}', space=vmem, size = 0x12000, scoped, tag = 'internal scratch']
  #allocation2 [shape = 'f32[8,1]{1,0:T(8,128)}', space=vmem, size = 0x1000, scoped, tag = 'scratch operand']
  %s0 = inlined_call_operand.hbm [shape: f32[8,256], index: 0, kind: input, shape index: {}]
  %s1 = inlined_call_operand.vmem [shape: f32[8,1], index: 1, kind: output, shape index: {}]
  %s2 = sld [smem:[#allocation0]]
  $region26: #{tpu_custom_call.1} parent=0
    _
  %s4 = ssub.s32 1, %s2
  %s5 = scalar_select 0, %s4, %s2
  $region1: #{tpu_custom_call.1} parent=0
    #allocation3 [shape = 'u8[8192]{0}', space=vmem, size = 0x2000, scoped, tag = 'input window, operand 0, single buffered']
    #allocation4 [shape = 's32[1]{0}', space=sflag, size = 0x4, scoped, tag = 'scoped memory for tpu_custom_call.1']
    %6 = vsyncpa [#allocation4], 0
    // Predicated region
    $region2: #{tpu_custom_call.1} parent=1 // pred_check
      _
    $region3: #{tpu_custom_call.1} parent=1 // pred_check_branch
      %8 = sbr.rel (0) target = $region5
    $region4: #{tpu_custom_call.1} parent=1 // pred_region
      %s10 = ssub.s32 256, 256
      %11 = vsyncadd [#allocation4], %s10
      %s13 = sshll.u32 [#allocation3], 4
      %s14 = int_to_ptr.vmem [resolvable:$true] %s13
      %16 = dma.hbm_to_vmem [thread:$0]  %s0, 256, %s14, [#allocation4]
    $region5: #{tpu_custom_call.1} parent=1 // pred_fallthru
      _
    // Predicated region
    $region6: #{tpu_custom_call.1} parent=1 // pred_check
      _
    $region7: #{tpu_custom_call.1} parent=1 // pred_check_branch
      %18 = sbr.rel (0) target = $region9
    $region8: #{tpu_custom_call.1} parent=1 // pred_region
      %19 = dma.done [#allocation4], 256
    $region9: #{tpu_custom_call.1} parent=1 // pred_fallthru
      _
    %p20 = scmp.eq.s32.totalorder 0, 0
    // Predicated region
    $region10: #{tpu_custom_call.1} parent=1 // pred_check
      %p21 = pneg %p20
    $region11: #{tpu_custom_call.1} parent=1 // pred_check_branch
      %23 = sbr.rel (%p21) target = $region13
    $region12: #{tpu_custom_call.1} parent=1 // pred_region
      %vm24 = vcmask 7168
      %25 = vst.msk [vmem:[#allocation2] sm:$0xff] %vm24, -inf
    $region13: #{tpu_custom_call.1} parent=1 // pred_fallthru
      _
    %v26 = vld [vmem:[#allocation3] sm:$0xff]
    %v27 = vld [vmem:[#allocation3 + $0x8] sm:$0xff]
    %v28 = vld [vmem:[#allocation2] sm:$0xff]
    %v29 = vmax.f32 %v26, %v27
    %30 = vmax.xlane.f32.xlu0 %v29
    %v31 = vpop.xlane.xlu0 %30
    %v32 = vmax.f32 %v28, %v31
    %vm33 = vcmask 7168
    %34 = vst.msk [vmem:[#allocation2] sm:$0xff] %vm33, %v32
    // Predicated region
    $region14: #{tpu_custom_call.1} parent=1 // pred_check
      %p35 = pneg %p20
    $region15: #{tpu_custom_call.1} parent=1 // pred_check_branch
      %37 = sbr.rel (%p35) target = $region17
    $region16: #{tpu_custom_call.1} parent=1 // pred_region
      %v38 = vld [vmem:[#allocation2] sm:$0xff]
      %39 = vst.msk [vmem:[%s1] sm:$0xff] %vm33, %v38
    $region17: #{tpu_custom_call.1} parent=1 // pred_fallthru
      _
    // Predicated region
    $region18: #{tpu_custom_call.1} parent=1 // pred_check
      _
    $region19: #{tpu_custom_call.1} parent=1 // pred_check_branch
      %41 = sbr.rel (0) target = $region21
    $region20: #{tpu_custom_call.1} parent=1 // pred_region
      _
    $region21: #{tpu_custom_call.1} parent=1 // pred_fallthru
      _
    // Predicated region
    $region22: #{tpu_custom_call.1} parent=1 // pred_check
      _
    $region23: #{tpu_custom_call.1} parent=1 // pred_check_branch
      %43 = sbr.rel (0) target = $region25
    $region24: #{tpu_custom_call.1} parent=1 // pred_region
      _
    $region25: #{tpu_custom_call.1} parent=1 // pred_fallthru
      _
    %44 = vsyncpa [#allocation4], 1

</llo_original>
